<compile_context>
chip_gen: v5e
topology: v5e:2x2
jax: 0.10.0
libtpu: 0.0.40
codegen_flags: <defaults>
</compile_context>

<pallas_src>
import functools

import jax
import jax.numpy as jnp
from jax.experimental import pallas as pl
from jax.experimental.pallas import tpu as pltpu

F_IN = 784          # input features (contraction dim, unpadded)
HID = 256           # hidden features
N_OUT = 10          # real output classes
N_PAD = 128         # padded output lane width (lane-dense stores)


def mlp_kernel(x_ref, w1_ref, b1_ref, w2_ref, b2_ref, o_ref):
    # x arrives as raw f32 straight from HBM; cast to bf16 in-kernel (VPU slack).
    x = x_ref[...].astype(jnp.bfloat16)

    # Hidden layer: (TB, 784) bf16 @ (784, 256) bf16 -> f32 acc
    h = jnp.dot(x, w1_ref[...], preferred_element_type=jnp.float32)
    h = h + b1_ref[...]
    # sigmoid(h) == 0.5 * (tanh(h/2) + 1): single EUP op per element, exact.
    h = 0.5 * (jnp.tanh(0.5 * h) + 1.0)

    # Output layer: (TB, 256) bf16 @ (256, 128) bf16 -> f32 acc
    logits = jnp.dot(h.astype(jnp.bfloat16), w2_ref[...],
                     preferred_element_type=jnp.float32)
    logits = logits + b2_ref[...]          # padded lanes carry -1e30 bias (f32)

    # Numerically stable softmax over the 128-wide (padded) lane axis.
    # exp(-1e30 - m) == 0, so padded lanes contribute nothing to the sum.
    m = jnp.max(logits, axis=-1, keepdims=True)
    e = jnp.exp(logits - m)
    # Exact reciprocal: only TB values per step; rows sum to 1 tightly.
    inv = pl.reciprocal(jnp.sum(e, axis=-1, keepdims=True), approx=False)
    o_ref[...] = (e * inv).astype(o_ref.dtype)


def _round_up(n, m):
    return ((n + m - 1) // m) * m


def prepare_params(w1, b1, w2, b2):
    """One-time pad/cast of the weights (call once at init, not per forward).

    w1: (784, 256), b1: (1, 256), w2: (256, 10), b2: (1, 10) — all f32,
    stored pre-transposed as (in, out) so the kernel computes x @ W directly.
    """
    w1_p = w1.astype(jnp.bfloat16)                                   # (784, 256)
    b1_p = b1.reshape(1, HID).astype(jnp.float32)                    # (1, 256)
    w2_p = jnp.pad(w2, ((0, 0), (0, N_PAD - N_OUT))).astype(jnp.bfloat16)  # (256, 128)
    b2_p = jnp.pad(b2.reshape(1, N_OUT).astype(jnp.float32),
                   ((0, 0), (0, N_PAD - N_OUT)),
                   constant_values=-1e30)                            # (1, 128)
    return w1_p, b1_p, w2_p, b2_p


def _vmem_budget_bytes(tb):
    x_io = 2 * tb * F_IN * 4                    # f32 input tile, double-buffered
    out_io = 2 * tb * N_PAD * 2                 # bf16 output tile, double-buffered
    wgt = 2 * ((F_IN * HID + HID * N_PAD) * 2   # bf16 weights (double-buffer allocs)
               + (HID + N_PAD) * 4)             # f32 biases
    interm = tb * (HID + N_PAD) * 4             # h + logits f32 temporaries
    need = x_io + out_io + wgt + interm + (8 << 20)   # + compiler scratch headroom
    return int(min(max(need, 16 << 20), 56 << 20))    # stay under v7x's 64 MiB


@functools.partial(jax.jit, static_argnames=("block_b",))
def network_forward(x, w1_p, b1_p, w2_p, b2_p, *, block_b=2048):
    """x: (B, 784) f32; params pre-padded by prepare_params(). Returns (B, 10) f32."""
    B = x.shape[0]

    # --- batch tiling (big tiles: per-grid-step overhead ~0.35 us) ---
    TB = min(block_b, _round_up(B, 8))
    grid = (pl.cdiv(B, TB),)

    cost = pl.CostEstimate(
        flops=2 * B * (F_IN * HID + HID * N_PAD),
        transcendentals=B * (HID + N_PAD),
        bytes_accessed=(B * F_IN * 4             # x (f32, read directly)
                        + F_IN * HID * 2         # w1 (bf16)
                        + HID * N_PAD * 2        # w2 (bf16)
                        + (HID + N_PAD) * 4      # biases (f32)
                        + B * N_PAD * 2),        # output (bf16)
    )

    out = pl.pallas_call(
        mlp_kernel,
        out_shape=jax.ShapeDtypeStruct((B, N_PAD), jnp.bfloat16),
        grid_spec=pltpu.PrefetchScalarGridSpec(
            num_scalar_prefetch=0,
            grid=grid,
            in_specs=[
                pl.BlockSpec((TB, F_IN), lambda i: (i, 0)),    # x tile (raw f32)
                pl.BlockSpec((F_IN, HID), lambda i: (0, 0)),   # w1 (resident)
                pl.BlockSpec((1, HID), lambda i: (0, 0)),      # b1 (resident)
                pl.BlockSpec((HID, N_PAD), lambda i: (0, 0)),  # w2 (resident)
                pl.BlockSpec((1, N_PAD), lambda i: (0, 0)),    # b2 (resident)
            ],
            out_specs=pl.BlockSpec((TB, N_PAD), lambda i: (i, 0)),
        ),
        compiler_params=pltpu.CompilerParams(
            dimension_semantics=("parallel",),       # batch tiles are independent
            vmem_limit_bytes=_vmem_budget_bytes(TB),
        ),
        cost_estimate=cost,
    )(x, w1_p, b1_p, w2_p, b2_p)

    # Slice the 10 real classes back out and hand the consumer f32.
    return out[:, :N_OUT].astype(jnp.float32)


def init_params(key):
    """Deterministic params matching nn.Linear default init (uniform +/- 1/sqrt(fan_in))."""
    k1, k2, k3, k4 = jax.random.split(key, 4)
    bound1 = 1.0 / jnp.sqrt(float(F_IN))
    bound2 = 1.0 / jnp.sqrt(float(HID))
    # Stored pre-transposed as (in, out) so the kernel computes x @ W directly.
    w1 = jax.random.uniform(k1, (F_IN, HID), jnp.float32, -bound1, bound1)
    b1 = jax.random.uniform(k2, (1, HID), jnp.float32, -bound1, bound1)
    w2 = jax.random.uniform(k3, (HID, N_OUT), jnp.float32, -bound2, bound2)
    b2 = jax.random.uniform(k4, (1, N_OUT), jnp.float32, -bound2, bound2)
    return w1, b1, w2, b2


if __name__ == "__main__":
    key = jax.random.PRNGKey(0)
    kx, kp = jax.random.split(key)
    B = 8
    x = jax.random.normal(kx, (B, F_IN), jnp.float32)
    w1, b1, w2, b2 = init_params(kp)

    # One-time weight prep (hoisted out of the per-call path).
    w1_p, b1_p, w2_p, b2_p = prepare_params(w1, b1, w2, b2)

    out = network_forward(x, w1_p, b1_p, w2_p, b2_p, block_b=2048)
    jax.block_until_ready(out)

    # Pure-JAX f32 reference (kernel uses bf16 matmuls + bf16 output store,
    # so the comparison tolerance is loose but tight enough for correctness).
    ref_h = 1.0 / (1.0 + jnp.exp(-(x @ w1 + b1)))
    ref_logits = ref_h @ w2 + b2
    ref = jax.nn.softmax(ref_logits, axis=1)

    assert out.shape == (B, N_OUT), out.shape
    assert jnp.all(jnp.isfinite(out)), "non-finite output"
    assert jnp.allclose(jnp.sum(out, axis=1), 1.0, atol=1e-2), "rows don't sum to 1"
    assert jnp.allclose(out, ref, atol=2e-2), "mismatch vs pure-JAX reference"

    print("KERNEL_OK")
</pallas_src>

<mosaic_0001>
module attributes {stable_mosaic.version = 11 : i64} {
  func.func @mlp_kernel(%arg0: i32, %arg1: memref<8x784xf32, #tpu.memory_space<vmem>>, %arg2: memref<784x256xbf16, #tpu.memory_space<vmem>>, %arg3: memref<1x256xf32, #tpu.memory_space<vmem>>, %arg4: memref<256x128xbf16, #tpu.memory_space<vmem>>, %arg5: memref<1x128xf32, #tpu.memory_space<vmem>>, %arg6: memref<8x128xbf16, #tpu.memory_space<vmem>>) attributes {dimension_semantics = [#tpu.dimension_semantics<parallel>], iteration_bounds = array<i64: 1>, scalar_prefetch = 0 : i64, scratch_operands = 0 : i64, tpu.core_type = #tpu.core_type<tc>, window_params = [{transform_indices = @transform_0, window_bounds = array<i64: 8, 784>}, {pipeline_mode = #tpu.pipeline_mode<synchronous>, transform_indices = @transform_1, window_bounds = array<i64: 784, 256>}, {pipeline_mode = #tpu.pipeline_mode<synchronous>, transform_indices = @transform_2, window_bounds = array<i64: 1, 256>}, {pipeline_mode = #tpu.pipeline_mode<synchronous>, transform_indices = @transform_3, window_bounds = array<i64: 256, 128>}, {pipeline_mode = #tpu.pipeline_mode<synchronous>, transform_indices = @transform_4, window_bounds = array<i64: 1, 128>}, {transform_indices = @transform_5, window_bounds = array<i64: 8, 128>}]} {
    %c0 = arith.constant 0 : index
    %c0_0 = arith.constant 0 : index
    %0 = vector.load %arg1[%c0, %c0_0] : memref<8x784xf32, #tpu.memory_space<vmem>>, vector<8x784xf32>
    %1 = arith.truncf %0 : vector<8x784xf32> to vector<8x784xbf16>
    %c0_1 = arith.constant 0 : index
    %c0_2 = arith.constant 0 : index
    %2 = vector.load %arg2[%c0_1, %c0_2] : memref<784x256xbf16, #tpu.memory_space<vmem>>, vector<784x256xbf16>
    %cst = arith.constant dense<0.000000e+00> : vector<8x256xf32>
    %3 = tpu.matmul %1, %2, %cst {dimension_numbers = #tpu.dot_dimension_numbers<[1], [0], [0], [1], [0, 0, 1, 1], [], []>} : vector<8x784xbf16>, vector<784x256xbf16>, vector<8x256xf32> -> vector<8x256xf32>
    %c0_3 = arith.constant 0 : index
    %c0_4 = arith.constant 0 : index
    %4 = vector.load %arg3[%c0_3, %c0_4] : memref<1x256xf32, #tpu.memory_space<vmem>>, vector<1x256xf32>
    %5 = vector.broadcast %4 : vector<1x256xf32> to vector<8x256xf32>
    %6 = arith.addf %3, %5 : vector<8x256xf32>
    %cst_5 = arith.constant 5.000000e-01 : f32
    %7 = vector.broadcast %cst_5 : f32 to vector<8x256xf32>
    %8 = arith.mulf %7, %6 : vector<8x256xf32>
    %9 = math.tanh %8 : vector<8x256xf32>
    %cst_6 = arith.constant 1.000000e+00 : f32
    %10 = vector.broadcast %cst_6 : f32 to vector<8x256xf32>
    %11 = arith.addf %9, %10 : vector<8x256xf32>
    %cst_7 = arith.constant 5.000000e-01 : f32
    %12 = vector.broadcast %cst_7 : f32 to vector<8x256xf32>
    %13 = arith.mulf %12, %11 : vector<8x256xf32>
    %14 = arith.truncf %13 : vector<8x256xf32> to vector<8x256xbf16>
    %c0_8 = arith.constant 0 : index
    %c0_9 = arith.constant 0 : index
    %15 = vector.load %arg4[%c0_8, %c0_9] : memref<256x128xbf16, #tpu.memory_space<vmem>>, vector<256x128xbf16>
    %cst_10 = arith.constant dense<0.000000e+00> : vector<8x128xf32>
    %16 = tpu.matmul %14, %15, %cst_10 {dimension_numbers = #tpu.dot_dimension_numbers<[1], [0], [0], [1], [0, 0, 1, 1], [], []>} : vector<8x256xbf16>, vector<256x128xbf16>, vector<8x128xf32> -> vector<8x128xf32>
    %c0_11 = arith.constant 0 : index
    %c0_12 = arith.constant 0 : index
    %17 = vector.load %arg5[%c0_11, %c0_12] : memref<1x128xf32, #tpu.memory_space<vmem>>, vector<1x128xf32>
    %18 = vector.broadcast %17 : vector<1x128xf32> to vector<8x128xf32>
    %19 = arith.addf %16, %18 : vector<8x128xf32>
    %cst_13 = arith.constant dense<0xFF800000> : vector<8xf32>
    %20 = vector.multi_reduction <maximumf>, %19, %cst_13 [1] : vector<8x128xf32> to vector<8xf32>
    %21 = vector.shape_cast %20 : vector<8xf32> to vector<8x1xf32>
    %22 = vector.broadcast %21 : vector<8x1xf32> to vector<8x128xf32>
    %23 = arith.subf %19, %22 : vector<8x128xf32>
    %24 = math.exp %23 : vector<8x128xf32>
    %cst_14 = arith.constant dense<0.000000e+00> : vector<8xf32>
    %25 = vector.multi_reduction <add>, %24, %cst_14 [1] : vector<8x128xf32> to vector<8xf32>
    %26 = vector.shape_cast %25 : vector<8xf32> to vector<8x1xf32>
    %27 = tpu.reciprocal %26 : vector<8x1xf32> -> vector<8x1xf32>
    %28 = vector.broadcast %27 : vector<8x1xf32> to vector<8x128xf32>
    %29 = arith.mulf %24, %28 : vector<8x128xf32>
    %30 = arith.truncf %29 : vector<8x128xf32> to vector<8x128xbf16>
    %c0_15 = arith.constant 0 : index
    %c0_16 = arith.constant 0 : index
    %31 = vector.load %arg6[%c0_15, %c0_16] : memref<8x128xbf16, #tpu.memory_space<vmem>>, vector<8x128xbf16>
    tpu.vector_store %arg6[%c0_15, %c0_16], %30 {strides = array<i32>} : memref<8x128xbf16, #tpu.memory_space<vmem>>, vector<8x128xbf16>,
    return
  }
  func.func @transform_0(%arg0: i32) -> (i32, i32) {
    %c0_i32 = arith.constant 0 : i32
    %c0_i32_0 = arith.constant 0 : i32
    return %arg0, %c0_i32 : i32, i32
  }
  func.func @transform_1(%arg0: i32) -> (i32, i32) {
    %c0_i32 = arith.constant 0 : i32
    %c0_i32_0 = arith.constant 0 : i32
    %c0_i32_1 = arith.constant 0 : i32
    return %c0_i32, %c0_i32_0 : i32, i32
  }
  func.func @transform_2(%arg0: i32) -> (i32, i32) {
    %c0_i32 = arith.constant 0 : i32
    %c0_i32_0 = arith.constant 0 : i32
    %c0_i32_1 = arith.constant 0 : i32
    return %c0_i32, %c0_i32_0 : i32, i32
  }
  func.func @transform_3(%arg0: i32) -> (i32, i32) {
    %c0_i32 = arith.constant 0 : i32
    %c0_i32_0 = arith.constant 0 : i32
    %c0_i32_1 = arith.constant 0 : i32
    return %c0_i32, %c0_i32_0 : i32, i32
  }
  func.func @transform_4(%arg0: i32) -> (i32, i32) {
    %c0_i32 = arith.constant 0 : i32
    %c0_i32_0 = arith.constant 0 : i32
    %c0_i32_1 = arith.constant 0 : i32
    return %c0_i32, %c0_i32_0 : i32, i32
  }
  func.func @transform_5(%arg0: i32) -> (i32, i32) {
    %c0_i32 = arith.constant 0 : i32
    %c0_i32_0 = arith.constant 0 : i32
    return %arg0, %c0_i32 : i32, i32
  }
}

</mosaic_0001>

<llo_original>
// kernel: network_forward.1
$region0: #{network_forward.1}
  #allocation0 [shape = 'u32[]', space=smem, size = 0x4, offset = 0x4, fixed_abs, tag = 'smem constant byte address 0x4 - core index']
  #allocation1 [shape = 'u32[72,128]{1,0:T(1,128)}', space=vmem, size = 0x9000, scoped, tag = 'internal scratch']
  %s0 = inlined_call_operand.hbm [shape: f32[8,784], index: 0, kind: input, shape index: {}]
  %s1 = inlined_call_operand.hbm [shape: bf16[784,256], index: 1, kind: input, shape index: {}]
  %s2 = inlined_call_operand.hbm [shape: f32[1,256], index: 2, kind: input, shape index: {}]
  %s3 = inlined_call_operand.hbm [shape: bf16[256,128], index: 3, kind: input, shape index: {}]
  %s4 = inlined_call_operand.vmem [shape: f32[1,128], index: 4, kind: input, shape index: {}]
  %s5 = inlined_call_operand.vmem [shape: bf16[8,128], index: 5, kind: output, shape index: {}]
  %s6 = sld [smem:[#allocation0]]
  $region46: #{network_forward.1} parent=0
    _
  %s8 = ssub.s32 1, %s6
  %s9 = scalar_select 0, %s8, %s6
  $region1: #{network_forward.1} parent=0
    #allocation2 [shape = 'u8[28672]{0}', space=vmem, size = 0x7000, scoped, tag = 'input window, operand 0, single buffered']
    #allocation3 [shape = 's32[1]{0}', space=sflag, size = 0x4, scoped, tag = 'scoped memory for network_forward.1']
    #allocation4 [shape = 'u8[401408]{0}', space=vmem, size = 0x62000, scoped, tag = 'input window, operand 1, single buffered']
    #allocation5 [shape = 's32[1]{0}', space=sflag, size = 0x4, scoped, tag = 'scoped memory for network_forward.1']
    #allocation6 [shape = 'u8[1024]{0}', space=vmem, size = 0x400, scoped, tag = 'input window, operand 2, single buffered']
    #allocation7 [shape = 'u8[65536]{0}', space=vmem, size = 0x10000, scoped, tag = 'input window, operand 3, single buffered']
    #allocation8 [shape = 's32[1]{0}', space=sflag, size = 0x4, scoped, tag = 'scoped memory for network_forward.1']
    %10 = vsyncpa [#allocation3], 0
    %11 = vsyncpa [#allocation5], 0
    %12 = vsyncpa [#allocation8], 0
    // Predicated region
    $region2: #{network_forward.1} parent=1 // pred_check
      _
    $region3: #{network_forward.1} parent=1 // pred_check_branch
      %14 = sbr.rel (0) target = $region5
    $region4: #{network_forward.1} parent=1 // pred_region
      %16 = vsyncadd [#allocation3], 0
      %s18 = sshll.u32 %s0, 4
      %s19 = int_to_ptr.hbm [resolvable:$true] %s18
      %s20 = sshll.u32 [#allocation2], 4
      %s21 = int_to_ptr.vmem [resolvable:$true] %s20
      %23 = dma.hbm_to_vmem [thread:$0]  %s19, 896, %s21, [#allocation3]
    $region5: #{network_forward.1} parent=1 // pred_fallthru
      _
    // Predicated region
    $region6: #{network_forward.1} parent=1 // pred_check
      _
    $region7: #{network_forward.1} parent=1 // pred_check_branch
      %25 = sbr.rel (0) target = $region9
    $region8: #{network_forward.1} parent=1 // pred_region
      %27 = vsyncadd [#allocation5], 0
      %s28 = sshll.u32 %s1, 4
      %s29 = int_to_ptr.hbm [resolvable:$true] %s28
      %s30 = sshll.u32 [#allocation4], 4
      %s31 = int_to_ptr.vmem [resolvable:$true] %s30
      %36 = dma.hbm_to_vmem [thread:$0]  %s29, 12544, %s31, [#allocation5], 128, 128, 8
    $region9: #{network_forward.1} parent=1 // pred_fallthru
      _
    // Predicated region
    $region10: #{network_forward.1} parent=1 // pred_check
      _
    $region11: #{network_forward.1} parent=1 // pred_check_branch
      %38 = sbr.rel (0) target = $region13
    $region12: #{network_forward.1} parent=1 // pred_region
      %40 = vsyncadd [#allocation5], 0
      %s42 = sshll.u32 %s2, 4
      %s43 = int_to_ptr.hbm [resolvable:$true] %s42
      %s44 = sshll.u32 [#allocation6], 4
      %s45 = int_to_ptr.vmem [resolvable:$true] %s44
      %47 = dma.hbm_to_vmem [thread:$0]  %s43, 32, %s45, [#allocation5]
    $region13: #{network_forward.1} parent=1 // pred_fallthru
      _
    // Predicated region
    $region14: #{network_forward.1} parent=1 // pred_check
      _
    $region15: #{network_forward.1} parent=1 // pred_check_branch
      %49 = sbr.rel (0) target = $region17
    $region16: #{network_forward.1} parent=1 // pred_region
      %51 = vsyncadd [#allocation8], 0
      %s52 = sshll.u32 %s3, 4
      %s53 = int_to_ptr.hbm [resolvable:$true] %s52
      %s54 = sshll.u32 [#allocation7], 4
      %s55 = int_to_ptr.vmem [resolvable:$true] %s54
      %60 = dma.hbm_to_vmem [thread:$0]  %s53, 2048, %s55, [#allocation8], 64, 64, 4
    $region17: #{network_forward.1} parent=1 // pred_fallthru
      _
    // Predicated region
    $region18: #{network_forward.1} parent=1 // pred_check
      _
    $region19: #{network_forward.1} parent=1 // pred_check_branch
      %62 = sbr.rel (0) target = $region21
    $region20: #{network_forward.1} parent=1 // pred_region
      _
    $region21: #{network_forward.1} parent=1 // pred_fallthru
      _
    // Predicated region
    $region22: #{network_forward.1} parent=1 // pred_check
      _
    $region23: #{network_forward.1} parent=1 // pred_check_branch
      %64 = sbr.rel (0) target = $region25
    $region24: #{network_forward.1} parent=1 // pred_region
      %66 = dma.done [#allocation3], 896
    $region25: #{network_forward.1} parent=1 // pred_fallthru
      _
    // Predicated region
    $region26: #{network_forward.1} parent=1 // pred_check
      _
    $region27: #{network_forward.1} parent=1 // pred_check_branch
      %68 = sbr.rel (0) target = $region29
    $region28: #{network_forward.1} parent=1 // pred_region
      %70 = dma.done [#allocation5], 12544
    $region29: #{network_forward.1} parent=1 // pred_fallthru
      _
    // Predicated region
    $region30: #{network_forward.1} parent=1 // pred_check
      _
    $region31: #{network_forward.1} parent=1 // pred_check_branch
      %72 = sbr.rel (0) target = $region33
    $region32: #{network_forward.1} parent=1 // pred_region
      %74 = dma.done [#allocation5], 32
    $region33: #{network_forward.1} parent=1 // pred_fallthru
      _
    // Predicated region
    $region34: #{network_forward.1} parent=1 // pred_check
      _
    $region35: #{network_forward.1} parent=1 // pred_check_branch
      %76 = sbr.rel (0) target = $region37
    $region36: #{network_forward.1} parent=1 // pred_region
      %78 = dma.done [#allocation8], 2048
    $region37: #{network_forward.1} parent=1 // pred_fallthru
      _
    %v80 = vld [vmem:[#allocation2] sm:$0xff]
    %v81 = vld [vmem:[#allocation2 + $0x8] sm:$0xff]
    %v82 = vld [vmem:[#allocation2 + $0x10] sm:$0xff]
    %v83 = vld [vmem:[#allocation2 + $0x18] sm:$0xff]
    %v84 = vld [vmem:[#allocation2 + $0x20] sm:$0xff]
    %v85 = vld [vmem:[#allocation2 + $0x28] sm:$0xff]
    %v86 = vld [vmem:[#allocation2 + $0x30] sm:$0xff]
    %v87 = vpack.c.bf16 %v80, %v80
    %v88 = vpack.c.bf16 %v81, %v81
    %v89 = vpack.c.bf16 %v82, %v82
    %v90 = vpack.c.bf16 %v83, %v83
    %v91 = vpack.c.bf16 %v84, %v84
    %v92 = vpack.c.bf16 %v85, %v85
    %v93 = vpack.c.bf16 %v86, %v86
    %v94 = vld [vmem:[#allocation4] sm:$0xff]
    %v95 = vld [vmem:[#allocation4 + $0x8] sm:$0xff]
    %v96 = vld [vmem:[#allocation4 + $0x10] sm:$0xff]
    %v97 = vld [vmem:[#allocation4 + $0x18] sm:$0xff]
    %v98 = vld [vmem:[#allocation4 + $0x20] sm:$0xff]
    %v99 = vld [vmem:[#allocation4 + $0x28] sm:$0xff]
    %v100 = vld [vmem:[#allocation4 + $0x30] sm:$0xff]
    %v101 = vld [vmem:[#allocation4 + $0x38] sm:$0xff]
    %v102 = vld [vmem:[#allocation4 + $0x40] sm:$0xff]
    %v103 = vld [vmem:[#allocation4 + $0x48] sm:$0xff]
    %v104 = vld [vmem:[#allocation4 + $0x50] sm:$0xff]
    %v105 = vld [vmem:[#allocation4 + $0x58] sm:$0xff]
    %v106 = vld [vmem:[#allocation4 + $0x60] sm:$0xff]
    %v107 = vld [vmem:[#allocation4 + $0x68] sm:$0xff]
    %v108 = vld [vmem:[#allocation4 + $0x70] sm:$0xff]
    %v109 = vld [vmem:[#allocation4 + $0x78] sm:$0xff]
    %v110 = vld [vmem:[#allocation4 + $0x80] sm:$0xff]
    %v111 = vld [vmem:[#allocation4 + $0x88] sm:$0xff]
    %v112 = vld [vmem:[#allocation4 + $0x90] sm:$0xff]
    %v113 = vld [vmem:[#allocation4 + $0x98] sm:$0xff]
    %v114 = vld [vmem:[#allocation4 + $0xa0] sm:$0xff]
    %v115 = vld [vmem:[#allocation4 + $0xa8] sm:$0xff]
    %v116 = vld [vmem:[#allocation4 + $0xb0] sm:$0xff]
    %v117 = vld [vmem:[#allocation4 + $0xb8] sm:$0xff]
    %v118 = vld [vmem:[#allocation4 + $0xc0] sm:$0xff]
    %v119 = vld [vmem:[#allocation4 + $0xc8] sm:$0xff]
    %v120 = vld [vmem:[#allocation4 + $0xd0] sm:$0xff]
    %v121 = vld [vmem:[#allocation4 + $0xd8] sm:$0xff]
    %v122 = vld [vmem:[#allocation4 + $0xe0] sm:$0xff]
    %v123 = vld [vmem:[#allocation4 + $0xe8] sm:$0xff]
    %v124 = vld [vmem:[#allocation4 + $0xf0] sm:$0xff]
    %v125 = vld [vmem:[#allocation4 + $0xf8] sm:$0xff]
    %v126 = vld [vmem:[#allocation4 + $0x100] sm:$0xff]
    %v127 = vld [vmem:[#allocation4 + $0x108] sm:$0xff]
    %v128 = vld [vmem:[#allocation4 + $0x110] sm:$0xff]
    %v129 = vld [vmem:[#allocation4 + $0x118] sm:$0xff]
    %v130 = vld [vmem:[#allocation4 + $0x120] sm:$0xff]
    %v131 = vld [vmem:[#allocation4 + $0x128] sm:$0xff]
    %v132 = vld [vmem:[#allocation4 + $0x130] sm:$0xff]
    %v133 = vld [vmem:[#allocation4 + $0x138] sm:$0xff]
    %v134 = vld [vmem:[#allocation4 + $0x140] sm:$0xff]
    %v135 = vld [vmem:[#allocation4 + $0x148] sm:$0xff]
    %v136 = vld [vmem:[#allocation4 + $0x150] sm:$0xff]
    %v137 = vld [vmem:[#allocation4 + $0x158] sm:$0xff]
    %v138 = vld [vmem:[#allocation4 + $0x160] sm:$0xff]
    %v139 = vld [vmem:[#allocation4 + $0x168] sm:$0xff]
    %v140 = vld [vmem:[#allocation4 + $0x170] sm:$0xff]
    %v141 = vld [vmem:[#allocation4 + $0x178] sm:$0xff]
    %v142 = vld [vmem:[#allocation4 + $0x180] sm:$0xff]
    %v143 = vld [vmem:[#allocation4 + $0x188] sm:$0xff]
    %v144 = vld [vmem:[#allocation4 + $0x190] sm:$0xff]
    %v145 = vld [vmem:[#allocation4 + $0x198] sm:$0xff]
    %v146 = vld [vmem:[#allocation4 + $0x1a0] sm:$0xff]
    %v147 = vld [vmem:[#allocation4 + $0x1a8] sm:$0xff]
    %v148 = vld [vmem:[#allocation4 + $0x1b0] sm:$0xff]
    %v149 = vld [vmem:[#allocation4 + $0x1b8] sm:$0xff]
    %v150 = vld [vmem:[#allocation4 + $0x1c0] sm:$0xff]
    %v151 = vld [vmem:[#allocation4 + $0x1c8] sm:$0xff]
    %v152 = vld [vmem:[#allocation4 + $0x1d0] sm:$0xff]
    %v153 = vld [vmem:[#allocation4 + $0x1d8] sm:$0xff]
    %v154 = vld [vmem:[#allocation4 + $0x1e0] sm:$0xff]
    %v155 = vld [vmem:[#allocation4 + $0x1e8] sm:$0xff]
    %v156 = vld [vmem:[#allocation4 + $0x1f0] sm:$0xff]
    %v157 = vld [vmem:[#allocation4 + $0x1f8] sm:$0xff]
    %v158 = vld [vmem:[#allocation4 + $0x200] sm:$0xff]
    %v159 = vld [vmem:[#allocation4 + $0x208] sm:$0xff]
    %v160 = vld [vmem:[#allocation4 + $0x210] sm:$0xff]
    %v161 = vld [vmem:[#allocation4 + $0x218] sm:$0xff]
    %v162 = vld [vmem:[#allocation4 + $0x220] sm:$0xff]
    %v163 = vld [vmem:[#allocation4 + $0x228] sm:$0xff]
    %v164 = vld [vmem:[#allocation4 + $0x230] sm:$0xff]
    %v165 = vld [vmem:[#allocation4 + $0x238] sm:$0xff]
    %v166 = vld [vmem:[#allocation4 + $0x240] sm:$0xff]
    %v167 = vld [vmem:[#allocation4 + $0x248] sm:$0xff]
    %v168 = vld [vmem:[#allocation4 + $0x250] sm:$0xff]
    %v169 = vld [vmem:[#allocation4 + $0x258] sm:$0xff]
    %v170 = vld [vmem:[#allocation4 + $0x260] sm:$0xff]
    %v171 = vld [vmem:[#allocation4 + $0x268] sm:$0xff]
    %v172 = vld [vmem:[#allocation4 + $0x270] sm:$0xff]
    %v173 = vld [vmem:[#allocation4 + $0x278] sm:$0xff]
    %v174 = vld [vmem:[#allocation4 + $0x280] sm:$0xff]
    %v175 = vld [vmem:[#allocation4 + $0x288] sm:$0xff]
    %v176 = vld [vmem:[#allocation4 + $0x290] sm:$0xff]
    %v177 = vld [vmem:[#allocation4 + $0x298] sm:$0xff]
    %v178 = vld [vmem:[#allocation4 + $0x2a0] sm:$0xff]
    %v179 = vld [vmem:[#allocation4 + $0x2a8] sm:$0xff]
    %v180 = vld [vmem:[#allocation4 + $0x2b0] sm:$0xff]
    %v181 = vld [vmem:[#allocation4 + $0x2b8] sm:$0xff]
    %v182 = vld [vmem:[#allocation4 + $0x2c0] sm:$0xff]
    %v183 = vld [vmem:[#allocation4 + $0x2c8] sm:$0xff]
    %v184 = vld [vmem:[#allocation4 + $0x2d0] sm:$0xff]
    %v185 = vld [vmem:[#allocation4 + $0x2d8] sm:$0xff]
    %v186 = vld [vmem:[#allocation4 + $0x2e0] sm:$0xff]
    %v187 = vld [vmem:[#allocation4 + $0x2e8] sm:$0xff]
    %v188 = vld [vmem:[#allocation4 + $0x2f0] sm:$0xff]
    %v189 = vld [vmem:[#allocation4 + $0x2f8] sm:$0xff]
    %v190 = vld [vmem:[#allocation4 + $0x300] sm:$0xff]
    %v191 = vld [vmem:[#allocation4 + $0x308] sm:$0xff]
    %v192 = vld [vmem:[#allocation6] sm:$0x3]
    %v194 = vperm.slane %v192, 0
    %v195 = vperm.slane %v192, 1
    %v296 = vunpack.c.l.b16 %v94
    %v297 = vunpack.c.h.b16 %v94
    %v298 = vunpack.c.l.b16 %v95
    %v299 = vunpack.c.h.b16 %v95
    %v300 = vunpack.c.l.b16 %v96
    %v301 = vunpack.c.h.b16 %v96
    %v302 = vunpack.c.l.b16 %v97
    %v303 = vunpack.c.h.b16 %v97
    %v304 = vunpack.c.l.b16 %v98
    %v305 = vunpack.c.h.b16 %v98
    %v306 = vunpack.c.l.b16 %v99
    %v307 = vunpack.c.h.b16 %v99
    %v308 = vunpack.c.l.b16 %v100
    %v309 = vunpack.c.h.b16 %v100
    %v310 = vunpack.c.l.b16 %v101
    %v311 = vunpack.c.h.b16 %v101
    %v312 = vunpack.c.l.b16 %v102
    %v313 = vunpack.c.h.b16 %v102
    %v314 = vunpack.c.l.b16 %v103
    %v315 = vunpack.c.h.b16 %v103
    %v316 = vunpack.c.l.b16 %v104
    %v317 = vunpack.c.h.b16 %v104
    %v318 = vunpack.c.l.b16 %v105
    %v319 = vunpack.c.h.b16 %v105
    %v320 = vunpack.c.l.b16 %v106
    %v321 = vunpack.c.h.b16 %v106
    %v322 = vunpack.c.l.b16 %v107
    %v323 = vunpack.c.h.b16 %v107
    %v324 = vunpack.c.l.b16 %v108
    %v325 = vunpack.c.h.b16 %v108
    %v326 = vunpack.c.l.b16 %v109
    %v327 = vunpack.c.h.b16 %v109
    %v328 = vunpack.c.l.b16 %v110
    %v329 = vunpack.c.h.b16 %v110
    %v330 = vunpack.c.l.b16 %v111
    %v331 = vunpack.c.h.b16 %v111
    %v332 = vunpack.c.l.b16 %v112
    %v333 = vunpack.c.h.b16 %v112
    %v334 = vunpack.c.l.b16 %v113
    %v335 = vunpack.c.h.b16 %v113
    %v336 = vunpack.c.l.b16 %v114
    %v337 = vunpack.c.h.b16 %v114
    %v338 = vunpack.c.l.b16 %v115
    %v339 = vunpack.c.h.b16 %v115
    %v340 = vunpack.c.l.b16 %v116
    %v341 = vunpack.c.h.b16 %v116
    %v342 = vunpack.c.l.b16 %v117
    %v343 = vunpack.c.h.b16 %v117
    %v344 = vunpack.c.l.b16 %v118
    %v345 = vunpack.c.h.b16 %v118
    %v346 = vunpack.c.l.b16 %v119
    %v347 = vunpack.c.h.b16 %v119
    %v348 = vunpack.c.l.b16 %v120
    %v349 = vunpack.c.h.b16 %v120
    %v350 = vunpack.c.l.b16 %v121
    %v351 = vunpack.c.h.b16 %v121
    %v352 = vunpack.c.l.b16 %v122
    %v353 = vunpack.c.h.b16 %v122
    %v354 = vunpack.c.l.b16 %v123
    %v355 = vunpack.c.h.b16 %v123
    %v356 = vunpack.c.l.b16 %v124
    %v357 = vunpack.c.h.b16 %v124
    %v358 = vunpack.c.l.b16 %v125
    %v359 = vunpack.c.h.b16 %v125
    %v360 = vunpack.c.l.b16 %v126
    %v361 = vunpack.c.h.b16 %v126
    %v362 = vunpack.c.l.b16 %v127
    %v363 = vunpack.c.h.b16 %v127
    %v364 = vunpack.c.l.b16 %v128
    %v365 = vunpack.c.h.b16 %v128
    %v366 = vunpack.c.l.b16 %v129
    %v367 = vunpack.c.h.b16 %v129
    %v368 = vunpack.c.l.b16 %v130
    %v369 = vunpack.c.h.b16 %v130
    %v370 = vunpack.c.l.b16 %v131
    %v371 = vunpack.c.h.b16 %v131
    %v372 = vunpack.c.l.b16 %v132
    %v373 = vunpack.c.h.b16 %v132
    %v374 = vunpack.c.l.b16 %v133
    %v375 = vunpack.c.h.b16 %v133
    %v376 = vunpack.c.l.b16 %v134
    %v377 = vunpack.c.h.b16 %v134
    %v378 = vunpack.c.l.b16 %v135
    %v379 = vunpack.c.h.b16 %v135
    %v380 = vunpack.c.l.b16 %v136
    %v381 = vunpack.c.h.b16 %v136
    %v382 = vunpack.c.l.b16 %v137
    %v383 = vunpack.c.h.b16 %v137
    %v384 = vunpack.c.l.b16 %v138
    %v385 = vunpack.c.h.b16 %v138
    %v386 = vunpack.c.l.b16 %v139
    %v387 = vunpack.c.h.b16 %v139
    %v388 = vunpack.c.l.b16 %v140
    %v389 = vunpack.c.h.b16 %v140
    %v390 = vunpack.c.l.b16 %v141
    %v391 = vunpack.c.h.b16 %v141
    %v392 = vunpack.c.l.b16 %v142
    %v393 = vunpack.c.h.b16 %v142
    %v394 = vunpack.c.l.b16 %v143
    %v395 = vunpack.c.h.b16 %v143
    %v396 = vunpack.c.l.b16 %v144
    %v397 = vunpack.c.h.b16 %v144
    %v398 = vunpack.c.l.b16 %v145
    %v399 = vunpack.c.h.b16 %v145
    %v400 = vunpack.c.l.b16 %v146
    %v401 = vunpack.c.h.b16 %v146
    %v402 = vunpack.c.l.b16 %v147
    %v403 = vunpack.c.h.b16 %v147
    %v404 = vunpack.c.l.b16 %v148
    %v405 = vunpack.c.h.b16 %v148
    %v406 = vunpack.c.l.b16 %v149
    %v407 = vunpack.c.h.b16 %v149
    %v408 = vunpack.c.l.b16 %v150
    %v409 = vunpack.c.h.b16 %v150
    %v410 = vunpack.c.l.b16 %v151
    %v411 = vunpack.c.h.b16 %v151
    %v412 = vunpack.c.l.b16 %v152
    %v413 = vunpack.c.h.b16 %v152
    %v414 = vunpack.c.l.b16 %v153
    %v415 = vunpack.c.h.b16 %v153
    %v416 = vunpack.c.l.b16 %v154
    %v417 = vunpack.c.h.b16 %v154
    %v418 = vunpack.c.l.b16 %v155
    %v419 = vunpack.c.h.b16 %v155
    %v420 = vunpack.c.l.b16 %v156
    %v421 = vunpack.c.h.b16 %v156
    %v422 = vunpack.c.l.b16 %v157
    %v423 = vunpack.c.h.b16 %v157
    %v424 = vunpack.c.l.b16 %v158
    %v425 = vunpack.c.h.b16 %v158
    %v426 = vunpack.c.l.b16 %v159
    %v427 = vunpack.c.h.b16 %v159
    %v428 = vunpack.c.l.b16 %v160
    %v429 = vunpack.c.h.b16 %v160
    %v430 = vunpack.c.l.b16 %v161
    %v431 = vunpack.c.h.b16 %v161
    %v432 = vunpack.c.l.b16 %v162
    %v433 = vunpack.c.h.b16 %v162
    %v434 = vunpack.c.l.b16 %v163
    %v435 = vunpack.c.h.b16 %v163
    %v436 = vunpack.c.l.b16 %v164
    %v437 = vunpack.c.h.b16 %v164
    %v438 = vunpack.c.l.b16 %v165
    %v439 = vunpack.c.h.b16 %v165
    %v440 = vunpack.c.l.b16 %v166
    %v441 = vunpack.c.h.b16 %v166
    %v442 = vunpack.c.l.b16 %v167
    %v443 = vunpack.c.h.b16 %v167
    %v444 = vunpack.c.l.b16 %v168
    %v445 = vunpack.c.h.b16 %v168
    %v446 = vunpack.c.l.b16 %v169
    %v447 = vunpack.c.h.b16 %v169
    %v448 = vunpack.c.l.b16 %v170
    %v449 = vunpack.c.h.b16 %v170
    %v450 = vunpack.c.l.b16 %v171
    %v451 = vunpack.c.h.b16 %v171
    %v452 = vunpack.c.l.b16 %v172
    %v453 = vunpack.c.h.b16 %v172
    %v454 = vunpack.c.l.b16 %v173
    %v455 = vunpack.c.h.b16 %v173
    %v456 = vunpack.c.l.b16 %v174
    %v457 = vunpack.c.h.b16 %v174
    %v458 = vunpack.c.l.b16 %v175
    %v459 = vunpack.c.h.b16 %v175
    %v460 = vunpack.c.l.b16 %v176
    %v461 = vunpack.c.h.b16 %v176
    %v462 = vunpack.c.l.b16 %v177
    %v463 = vunpack.c.h.b16 %v177
    %v464 = vunpack.c.l.b16 %v178
    %v465 = vunpack.c.h.b16 %v178
    %v466 = vunpack.c.l.b16 %v179
    %v467 = vunpack.c.h.b16 %v179
    %v468 = vunpack.c.l.b16 %v180
    %v469 = vunpack.c.h.b16 %v180
    %v470 = vunpack.c.l.b16 %v181
    %v471 = vunpack.c.h.b16 %v181
    %v472 = vunpack.c.l.b16 %v182
    %v473 = vunpack.c.h.b16 %v182
    %v474 = vunpack.c.l.b16 %v183
    %v475 = vunpack.c.h.b16 %v183
    %v476 = vunpack.c.l.b16 %v184
    %v477 = vunpack.c.h.b16 %v184
    %v478 = vunpack.c.l.b16 %v185
    %v479 = vunpack.c.h.b16 %v185
    %v480 = vunpack.c.l.b16 %v186
    %v481 = vunpack.c.h.b16 %v186
    %v482 = vunpack.c.l.b16 %v187
    %v483 = vunpack.c.h.b16 %v187
    %v484 = vunpack.c.l.b16 %v188
    %v485 = vunpack.c.h.b16 %v188
    %v486 = vunpack.c.l.b16 %v189
    %v487 = vunpack.c.h.b16 %v189
    %v488 = vunpack.c.l.b16 %v190
    %v489 = vunpack.c.h.b16 %v190
    %v490 = vunpack.c.l.b16 %v191
    %v491 = vunpack.c.h.b16 %v191
    %v492 = vpack.c.b16 %v298, %v296
    %v493 = vpack.c.b16 %v299, %v297
    %v494 = vpack.c.b16 %v302, %v300
    %v495 = vpack.c.b16 %v303, %v301
    %v496 = vpack.c.b16 %v306, %v304
    %v497 = vpack.c.b16 %v307, %v305
    %v498 = vpack.c.b16 %v310, %v308
    %v499 = vpack.c.b16 %v311, %v309
    %v500 = vpack.c.b16 %v314, %v312
    %v501 = vpack.c.b16 %v315, %v313
    %v502 = vpack.c.b16 %v318, %v316
    %v503 = vpack.c.b16 %v319, %v317
    %v504 = vpack.c.b16 %v322, %v320
    %v505 = vpack.c.b16 %v323, %v321
    %v506 = vpack.c.b16 %v326, %v324
    %v507 = vpack.c.b16 %v327, %v325
    %v508 = vpack.c.b16 %v330, %v328
    %v509 = vpack.c.b16 %v331, %v329
    %v510 = vpack.c.b16 %v334, %v332
    %v511 = vpack.c.b16 %v335, %v333
    %v512 = vpack.c.b16 %v338, %v336
    %v513 = vpack.c.b16 %v339, %v337
    %v514 = vpack.c.b16 %v342, %v340
    %v515 = vpack.c.b16 %v343, %v341
    %v516 = vpack.c.b16 %v346, %v344
    %v517 = vpack.c.b16 %v347, %v345
    %v518 = vpack.c.b16 %v350, %v348
    %v519 = vpack.c.b16 %v351, %v349
    %v520 = vpack.c.b16 %v354, %v352
    %v521 = vpack.c.b16 %v355, %v353
    %v522 = vpack.c.b16 %v358, %v356
    %v523 = vpack.c.b16 %v359, %v357
    %v524 = vpack.c.b16 %v362, %v360
    %v525 = vpack.c.b16 %v363, %v361
    %v526 = vpack.c.b16 %v366, %v364
    %v527 = vpack.c.b16 %v367, %v365
    %v528 = vpack.c.b16 %v370, %v368
    %v529 = vpack.c.b16 %v371, %v369
    %v530 = vpack.c.b16 %v374, %v372
    %v531 = vpack.c.b16 %v375, %v373
    %v532 = vpack.c.b16 %v378, %v376
    %v533 = vpack.c.b16 %v379, %v377
    %v534 = vpack.c.b16 %v382, %v380
    %v535 = vpack.c.b16 %v383, %v381
    %v536 = vpack.c.b16 %v386, %v384
    %v537 = vpack.c.b16 %v387, %v385
    %v538 = vpack.c.b16 %v390, %v388
    %v539 = vpack.c.b16 %v391, %v389
    %v540 = vpack.c.b16 %v394, %v392
    %v541 = vpack.c.b16 %v395, %v393
    %v542 = vpack.c.b16 %v398, %v396
    %v543 = vpack.c.b16 %v399, %v397
    %v544 = vpack.c.b16 %v402, %v400
    %v545 = vpack.c.b16 %v403, %v401
    %v546 = vpack.c.b16 %v406, %v404
    %v547 = vpack.c.b16 %v407, %v405
    %v548 = vpack.c.b16 %v410, %v408
    %v549 = vpack.c.b16 %v411, %v409
    %v550 = vpack.c.b16 %v414, %v412
    %v551 = vpack.c.b16 %v415, %v413
    %v552 = vpack.c.b16 %v418, %v416
    %v553 = vpack.c.b16 %v419, %v417
    %v554 = vpack.c.b16 %v422, %v420
    %v555 = vpack.c.b16 %v423, %v421
    %v556 = vpack.c.b16 %v426, %v424
    %v557 = vpack.c.b16 %v427, %v425
    %v558 = vpack.c.b16 %v430, %v428
    %v559 = vpack.c.b16 %v431, %v429
    %v560 = vpack.c.b16 %v434, %v432
    %v561 = vpack.c.b16 %v435, %v433
    %v562 = vpack.c.b16 %v438, %v436
    %v563 = vpack.c.b16 %v439, %v437
    %v564 = vpack.c.b16 %v442, %v440
    %v565 = vpack.c.b16 %v443, %v441
    %v566 = vpack.c.b16 %v446, %v444
    %v567 = vpack.c.b16 %v447, %v445
    %v568 = vpack.c.b16 %v450, %v448
    %v569 = vpack.c.b16 %v451, %v449
    %v570 = vpack.c.b16 %v454, %v452
    %v571 = vpack.c.b16 %v455, %v453
    %v572 = vpack.c.b16 %v458, %v456
    %v573 = vpack.c.b16 %v459, %v457
    %v574 = vpack.c.b16 %v462, %v460
    %v575 = vpack.c.b16 %v463, %v461
    %v576 = vpack.c.b16 %v466, %v464
    %v577 = vpack.c.b16 %v467, %v465
    %v578 = vpack.c.b16 %v470, %v468
    %v579 = vpack.c.b16 %v471, %v469
    %v580 = vpack.c.b16 %v474, %v472
    %v581 = vpack.c.b16 %v475, %v473
    %v582 = vpack.c.b16 %v478, %v476
    %v583 = vpack.c.b16 %v479, %v477
    %v584 = vpack.c.b16 %v482, %v480
    %v585 = vpack.c.b16 %v483, %v481
    %v586 = vpack.c.b16 %v486, %v484
    %v587 = vpack.c.b16 %v487, %v485
    %v588 = vpack.c.b16 %v490, %v488
    %v589 = vpack.c.b16 %v491, %v489
    %vm688 = vcmask 130048
    %v690 = vsel %vm688, %v93, 0
    %692 = vmatpush.bf16.msra.mxu0 %v506
    %693 = vmatpush.bf16.msra.mxu0 %v504
    %694 = vmatpush.bf16.msra.mxu0 %v502
    %695 = vmatpush.bf16.msra.mxu0 %v500
    %696 = vmatpush.bf16.msra.mxu0 %v498
    %697 = vmatpush.bf16.msra.mxu0 %v496
    %698 = vmatpush.bf16.msra.mxu0 %v494
    %699 = vmatpush.bf16.msra.mxu0 %v492
    %700 = vmatmul.bf16.gmra.mxu0 %v87
    %v701 = vpop.f32.mrf.mxu0
    %v702 = vadd.f32 %v194, %v701
    %v703 = vpop.f32.mrf.mxu0
    %704 = vdwg.mxu0
    %705 = vmatpush.bf16.msra.mxu0 %v522
    %706 = vmatpush.bf16.msra.mxu0 %v520
    %707 = vmatpush.bf16.msra.mxu0 %v518
    %708 = vmatpush.bf16.msra.mxu0 %v516
    %709 = vmatpush.bf16.msra.mxu0 %v514
    %710 = vmatpush.bf16.msra.mxu0 %v512
    %711 = vmatpush.bf16.msra.mxu0 %v510
    %712 = vmatpush.bf16.msra.mxu0 %v508
    %713 = vmatmul.bf16.gmra.mxu0 %v88
    %v714 = vpop.f32.mrf.mxu0
    %v715 = vadd.f32 %v702, %v714
    %v716 = vpop.f32.mrf.mxu0
    %717 = vdwg.mxu0
    %718 = vmatpush.bf16.msra.mxu0 %v538
    %719 = vmatpush.bf16.msra.mxu0 %v536
    %720 = vmatpush.bf16.msra.mxu0 %v534
    %721 = vmatpush.bf16.msra.mxu0 %v532
    %722 = vmatpush.bf16.msra.mxu0 %v530
    %723 = vmatpush.bf16.msra.mxu0 %v528
    %724 = vmatpush.bf16.msra.mxu0 %v526
    %725 = vmatpush.bf16.msra.mxu0 %v524
    %726 = vmatmul.bf16.gmra.mxu0 %v89
    %v727 = vpop.f32.mrf.mxu0
    %v728 = vadd.f32 %v715, %v727
    %v729 = vpop.f32.mrf.mxu0
    %730 = vdwg.mxu0
    %731 = vmatpush.bf16.msra.mxu0 %v554
    %732 = vmatpush.bf16.msra.mxu0 %v552
    %733 = vmatpush.bf16.msra.mxu0 %v550
    %734 = vmatpush.bf16.msra.mxu0 %v548
    %735 = vmatpush.bf16.msra.mxu0 %v546
    %736 = vmatpush.bf16.msra.mxu0 %v544
    %737 = vmatpush.bf16.msra.mxu0 %v542
    %738 = vmatpush.bf16.msra.mxu0 %v540
    %739 = vmatmul.bf16.gmra.mxu0 %v90
    %v740 = vpop.f32.mrf.mxu0
    %v741 = vadd.f32 %v728, %v740
    %v742 = vpop.f32.mrf.mxu0
    %743 = vdwg.mxu0
    %744 = vmatpush.bf16.msra.mxu0 %v570
    %745 = vmatpush.bf16.msra.mxu0 %v568
    %746 = vmatpush.bf16.msra.mxu0 %v566
    %747 = vmatpush.bf16.msra.mxu0 %v564
    %748 = vmatpush.bf16.msra.mxu0 %v562
    %749 = vmatpush.bf16.msra.mxu0 %v560
    %750 = vmatpush.bf16.msra.mxu0 %v558
    %751 = vmatpush.bf16.msra.mxu0 %v556
    %752 = vmatmul.bf16.gmra.mxu0 %v91
    %v753 = vpop.f32.mrf.mxu0
    %v754 = vadd.f32 %v741, %v753
    %v755 = vpop.f32.mrf.mxu0
    %756 = vdwg.mxu0
    %757 = vmatpush.bf16.msra.mxu0 %v586
    %758 = vmatpush.bf16.msra.mxu0 %v584
    %759 = vmatpush.bf16.msra.mxu0 %v582
    %760 = vmatpush.bf16.msra.mxu0 %v580
    %761 = vmatpush.bf16.msra.mxu0 %v578
    %762 = vmatpush.bf16.msra.mxu0 %v576
    %763 = vmatpush.bf16.msra.mxu0 %v574
    %764 = vmatpush.bf16.msra.mxu0 %v572
    %765 = vmatmul.bf16.gmra.mxu0 %v92
    %v766 = vpop.f32.mrf.mxu0
    %v767 = vadd.f32 %v754, %v766
    %v768 = vpop.f32.mrf.mxu0
    %769 = vdwg.mxu0
    %770 = vmatpush.bf16.msra.mxu0 0
    %771 = vmatpush.bf16.msra.mxu0 0
    %772 = vmatpush.bf16.msra.mxu0 0
    %773 = vmatpush.bf16.msra.mxu0 0
    %774 = vmatpush.bf16.msra.mxu0 0
    %775 = vmatpush.bf16.msra.mxu0 0
    %776 = vmatpush.bf16.msra.mxu0 0
    %777 = vmatpush.bf16.msra.mxu0 %v588
    %778 = vmatmul.bf16.gmra.mxu0 %v690
    %v779 = vpop.f32.mrf.mxu0
    %v780 = vadd.f32 %v767, %v779
    %v781 = vpop.f32.mrf.mxu0
    %782 = vdwg.mxu0
    %783 = vmatpush.bf16.msra.mxu0 %v507
    %784 = vmatpush.bf16.msra.mxu0 %v505
    %785 = vmatpush.bf16.msra.mxu0 %v503
    %786 = vmatpush.bf16.msra.mxu0 %v501
    %787 = vmatpush.bf16.msra.mxu0 %v499
    %788 = vmatpush.bf16.msra.mxu0 %v497
    %789 = vmatpush.bf16.msra.mxu0 %v495
    %790 = vmatpush.bf16.msra.mxu0 %v493
    %791 = vmatmul.bf16.gmra.mxu0 %v87
    %v792 = vpop.f32.mrf.mxu0
    %v793 = vadd.f32 %v195, %v792
    %v794 = vpop.f32.mrf.mxu0
    %795 = vdwg.mxu0
    %796 = vmatpush.bf16.msra.mxu0 %v523
    %797 = vmatpush.bf16.msra.mxu0 %v521
    %798 = vmatpush.bf16.msra.mxu0 %v519
    %799 = vmatpush.bf16.msra.mxu0 %v517
    %800 = vmatpush.bf16.msra.mxu0 %v515
    %801 = vmatpush.bf16.msra.mxu0 %v513
    %802 = vmatpush.bf16.msra.mxu0 %v511
    %803 = vmatpush.bf16.msra.mxu0 %v509
    %804 = vmatmul.bf16.gmra.mxu0 %v88
    %v805 = vpop.f32.mrf.mxu0
    %v806 = vadd.f32 %v793, %v805
    %v807 = vpop.f32.mrf.mxu0
    %808 = vdwg.mxu0
    %809 = vmatpush.bf16.msra.mxu0 %v539
    %810 = vmatpush.bf16.msra.mxu0 %v537
    %811 = vmatpush.bf16.msra.mxu0 %v535
    %812 = vmatpush.bf16.msra.mxu0 %v533
    %813 = vmatpush.bf16.msra.mxu0 %v531
    %814 = vmatpush.bf16.msra.mxu0 %v529
    %815 = vmatpush.bf16.msra.mxu0 %v527
    %816 = vmatpush.bf16.msra.mxu0 %v525
    %817 = vmatmul.bf16.gmra.mxu0 %v89
    %v818 = vpop.f32.mrf.mxu0
    %v819 = vadd.f32 %v806, %v818
    %v820 = vpop.f32.mrf.mxu0
    %821 = vdwg.mxu0
    %822 = vmatpush.bf16.msra.mxu0 %v555
    %823 = vmatpush.bf16.msra.mxu0 %v553
    %824 = vmatpush.bf16.msra.mxu0 %v551
    %825 = vmatpush.bf16.msra.mxu0 %v549
    %826 = vmatpush.bf16.msra.mxu0 %v547
    %827 = vmatpush.bf16.msra.mxu0 %v545
    %828 = vmatpush.bf16.msra.mxu0 %v543
    %829 = vmatpush.bf16.msra.mxu0 %v541
    %830 = vmatmul.bf16.gmra.mxu0 %v90
    %v831 = vpop.f32.mrf.mxu0
    %v832 = vadd.f32 %v819, %v831
    %v833 = vpop.f32.mrf.mxu0
    %834 = vdwg.mxu0
    %835 = vmatpush.bf16.msra.mxu0 %v571
    %836 = vmatpush.bf16.msra.mxu0 %v569
    %837 = vmatpush.bf16.msra.mxu0 %v567
    %838 = vmatpush.bf16.msra.mxu0 %v565
    %839 = vmatpush.bf16.msra.mxu0 %v563
    %840 = vmatpush.bf16.msra.mxu0 %v561
    %841 = vmatpush.bf16.msra.mxu0 %v559
    %842 = vmatpush.bf16.msra.mxu0 %v557
    %843 = vmatmul.bf16.gmra.mxu0 %v91
    %v844 = vpop.f32.mrf.mxu0
    %v845 = vadd.f32 %v832, %v844
    %v846 = vpop.f32.mrf.mxu0
    %847 = vdwg.mxu0
    %848 = vmatpush.bf16.msra.mxu0 %v587
    %849 = vmatpush.bf16.msra.mxu0 %v585
    %850 = vmatpush.bf16.msra.mxu0 %v583
    %851 = vmatpush.bf16.msra.mxu0 %v581
    %852 = vmatpush.bf16.msra.mxu0 %v579
    %853 = vmatpush.bf16.msra.mxu0 %v577
    %854 = vmatpush.bf16.msra.mxu0 %v575
    %855 = vmatpush.bf16.msra.mxu0 %v573
    %856 = vmatmul.bf16.gmra.mxu0 %v92
    %v857 = vpop.f32.mrf.mxu0
    %v858 = vadd.f32 %v845, %v857
    %v859 = vpop.f32.mrf.mxu0
    %860 = vdwg.mxu0
    %861 = vmatpush.bf16.msra.mxu0 0
    %862 = vmatpush.bf16.msra.mxu0 0
    %863 = vmatpush.bf16.msra.mxu0 0
    %864 = vmatpush.bf16.msra.mxu0 0
    %865 = vmatpush.bf16.msra.mxu0 0
    %866 = vmatpush.bf16.msra.mxu0 0
    %867 = vmatpush.bf16.msra.mxu0 0
    %868 = vmatpush.bf16.msra.mxu0 %v589
    %869 = vmatmul.bf16.gmra.mxu0 %v690
    %v870 = vpop.f32.mrf.mxu0
    %v871 = vadd.f32 %v858, %v870
    %v872 = vpop.f32.mrf.mxu0
    %873 = vdwg.mxu0
    %v874 = vmul.f32 %v780, 0.5
    %v875 = vmul.f32 %v871, 0.5
    %v876 = vtanh.pop %v874
    %v877 = vtanh.pop %v875
    %v878 = vadd.f32 %v876, 1.0
    %v879 = vadd.f32 %v877, 1.0
    %v880 = vmul.f32 %v878, 0.5
    %v881 = vmul.f32 %v879, 0.5
    %v882 = vpack.c.bf16 %v880, %v880
    %v883 = vpack.c.bf16 %v881, %v881
    %v884 = vld [vmem:[#allocation7] sm:$0xf]
    %v885 = vld [vmem:[#allocation7 + $0x4] sm:$0xf]
    %v886 = vld [vmem:[#allocation7 + $0x8] sm:$0xf]
    %v887 = vld [vmem:[#allocation7 + $0xc] sm:$0xf]
    %v888 = vld [vmem:[#allocation7 + $0x10] sm:$0xf]
    %v889 = vld [vmem:[#allocation7 + $0x14] sm:$0xf]
    %v890 = vld [vmem:[#allocation7 + $0x18] sm:$0xf]
    %v891 = vld [vmem:[#allocation7 + $0x1c] sm:$0xf]
    %v892 = vld [vmem:[#allocation7 + $0x20] sm:$0xf]
    %v893 = vld [vmem:[#allocation7 + $0x24] sm:$0xf]
    %v894 = vld [vmem:[#allocation7 + $0x28] sm:$0xf]
    %v895 = vld [vmem:[#allocation7 + $0x2c] sm:$0xf]
    %v896 = vld [vmem:[#allocation7 + $0x30] sm:$0xf]
    %v897 = vld [vmem:[#allocation7 + $0x34] sm:$0xf]
    %v898 = vld [vmem:[#allocation7 + $0x38] sm:$0xf]
    %v899 = vld [vmem:[#allocation7 + $0x3c] sm:$0xf]
    %v900 = vld [vmem:[#allocation7 + $0x40] sm:$0xf]
    %v901 = vld [vmem:[#allocation7 + $0x44] sm:$0xf]
    %v902 = vld [vmem:[#allocation7 + $0x48] sm:$0xf]
    %v903 = vld [vmem:[#allocation7 + $0x4c] sm:$0xf]
    %v904 = vld [vmem:[#allocation7 + $0x50] sm:$0xf]
    %v905 = vld [vmem:[#allocation7 + $0x54] sm:$0xf]
    %v906 = vld [vmem:[#allocation7 + $0x58] sm:$0xf]
    %v907 = vld [vmem:[#allocation7 + $0x5c] sm:$0xf]
    %v908 = vld [vmem:[#allocation7 + $0x60] sm:$0xf]
    %v909 = vld [vmem:[#allocation7 + $0x64] sm:$0xf]
    %v910 = vld [vmem:[#allocation7 + $0x68] sm:$0xf]
    %v911 = vld [vmem:[#allocation7 + $0x6c] sm:$0xf]
    %v912 = vld [vmem:[#allocation7 + $0x70] sm:$0xf]
    %v913 = vld [vmem:[#allocation7 + $0x74] sm:$0xf]
    %v914 = vld [vmem:[#allocation7 + $0x78] sm:$0xf]
    %v915 = vld [vmem:[#allocation7 + $0x7c] sm:$0xf]
    %v916 = vld [vmem:[%s4] sm:$0x1]
    %v918 = vperm.slane %v916, 0
    %v952 = vunpack.c.l.b16 %v884
    %v953 = vunpack.c.l.b16 %v885
    %v954 = vunpack.c.l.b16 %v886
    %v955 = vunpack.c.l.b16 %v887
    %v956 = vunpack.c.l.b16 %v888
    %v957 = vunpack.c.l.b16 %v889
    %v958 = vunpack.c.l.b16 %v890
    %v959 = vunpack.c.l.b16 %v891
    %v960 = vunpack.c.l.b16 %v892
    %v961 = vunpack.c.l.b16 %v893
    %v962 = vunpack.c.l.b16 %v894
    %v963 = vunpack.c.l.b16 %v895
    %v964 = vunpack.c.l.b16 %v896
    %v965 = vunpack.c.l.b16 %v897
    %v966 = vunpack.c.l.b16 %v898
    %v967 = vunpack.c.l.b16 %v899
    %v968 = vunpack.c.l.b16 %v900
    %v969 = vunpack.c.l.b16 %v901
    %v970 = vunpack.c.l.b16 %v902
    %v971 = vunpack.c.l.b16 %v903
    %v972 = vunpack.c.l.b16 %v904
    %v973 = vunpack.c.l.b16 %v905
    %v974 = vunpack.c.l.b16 %v906
    %v975 = vunpack.c.l.b16 %v907
    %v976 = vunpack.c.l.b16 %v908
    %v977 = vunpack.c.l.b16 %v909
    %v978 = vunpack.c.l.b16 %v910
    %v979 = vunpack.c.l.b16 %v911
    %v980 = vunpack.c.l.b16 %v912
    %v981 = vunpack.c.l.b16 %v913
    %v982 = vunpack.c.l.b16 %v914
    %v983 = vunpack.c.l.b16 %v915
    %v984 = vpack.c.b16 %v953, %v952
    %v985 = vpack.c.b16 %v955, %v954
    %v986 = vpack.c.b16 %v957, %v956
    %v987 = vpack.c.b16 %v959, %v958
    %v988 = vpack.c.b16 %v961, %v960
    %v989 = vpack.c.b16 %v963, %v962
    %v990 = vpack.c.b16 %v965, %v964
    %v991 = vpack.c.b16 %v967, %v966
    %v992 = vpack.c.b16 %v969, %v968
    %v993 = vpack.c.b16 %v971, %v970
    %v994 = vpack.c.b16 %v973, %v972
    %v995 = vpack.c.b16 %v975, %v974
    %v996 = vpack.c.b16 %v977, %v976
    %v997 = vpack.c.b16 %v979, %v978
    %v998 = vpack.c.b16 %v981, %v980
    %v999 = vpack.c.b16 %v983, %v982
    %1016 = vmatpush.bf16.msra.mxu0 %v991
    %1017 = vmatpush.bf16.msra.mxu0 %v990
    %1018 = vmatpush.bf16.msra.mxu0 %v989
    %1019 = vmatpush.bf16.msra.mxu0 %v988
    %1020 = vmatpush.bf16.msra.mxu0 %v987
    %1021 = vmatpush.bf16.msra.mxu0 %v986
    %1022 = vmatpush.bf16.msra.mxu0 %v985
    %1023 = vmatpush.bf16.msra.mxu0 %v984
    %1024 = vmatmul.bf16.gmra.mxu0 %v882
    %v1025 = vpop.f32.mrf.mxu0
    %v1026 = vadd.f32 %v918, %v1025
    %v1027 = vpop.f32.mrf.mxu0
    %1028 = vdwg.mxu0
    %1029 = vmatpush.bf16.msra.mxu0 %v999
    %1030 = vmatpush.bf16.msra.mxu0 %v998
    %1031 = vmatpush.bf16.msra.mxu0 %v997
    %1032 = vmatpush.bf16.msra.mxu0 %v996
    %1033 = vmatpush.bf16.msra.mxu0 %v995
    %1034 = vmatpush.bf16.msra.mxu0 %v994
    %1035 = vmatpush.bf16.msra.mxu0 %v993
    %1036 = vmatpush.bf16.msra.mxu0 %v992
    %1037 = vmatmul.bf16.gmra.mxu0 %v883
    %v1038 = vpop.f32.mrf.mxu0
    %v1039 = vadd.f32 %v1026, %v1038
    %v1040 = vpop.f32.mrf.mxu0
    %1041 = vdwg.mxu0
    %1042 = vmax.xlane.f32.xlu0 %v1039
    %v1043 = vpop.xlane.xlu0 %1042
    %v1044 = vsub.f32 %v1039, %v1043
    %v1045 = vmul.f32 %v1044, 1.442695
    %v1046 = vpow.pop %v1045
    %1047 = vadd.xlane.f32.xlu0 %v1046
    %v1048 = vpop.xlane.xlu0 %1047
    %v1049 = vrcp.pop %v1048
    %v1050 = vmul.f32 %v1048, %v1049
    %v1051 = vsub.f32 1.0, %v1050
    %v1052 = vmul.f32 %v1049, %v1051
    %v1053 = vadd.f32 %v1049, %v1052
    %vm1054 = vweird.f32 %v1048
    %vm1055 = vweird.f32 %v1049
    %vm1056 = vmor %vm1054, %vm1055
    %v1057 = vsel %vm1056, %v1049, %v1053
    %v1058 = vand.u32 2147483647, %v1048
    %vm1059 = vcmp.eq.f32.partialorder %v1058, 8.507059e+37
    %v1060 = vand.u32 %v1048, 2147483648
    %v1061 = vor.u32 1.1754944e-38, %v1060
    %v1062 = vsel %vm1059, %v1061, %v1057
    %v1063 = vmul.f32 %v1046, %v1062
    %v1064 = vpack.c.bf16 %v1063, %v1063
    %1065 = vst [vmem:[%s5] sm:$0xf] %v1064
    // Predicated region
    $region38: #{network_forward.1} parent=1 // pred_check
      _
    $region39: #{network_forward.1} parent=1 // pred_check_branch
      %1067 = sbr.rel (0) target = $region41
    $region40: #{network_forward.1} parent=1 // pred_region
      _
    $region41: #{network_forward.1} parent=1 // pred_fallthru
      _
    // Predicated region
    $region42: #{network_forward.1} parent=1 // pred_check
      _
    $region43: #{network_forward.1} parent=1 // pred_check_branch
      %1069 = sbr.rel (0) target = $region45
    $region44: #{network_forward.1} parent=1 // pred_region
      _
    $region45: #{network_forward.1} parent=1 // pred_fallthru
      _
    %1070 = vsyncpa [#allocation3], 1
    %1071 = vsyncpa [#allocation5], 1
    %1072 = vsyncpa [#allocation8], 1

</llo_original>
